<compile_context>
chip_gen: v7x
topology: tpu7x:2x2x1
jax: 0.10.0
libtpu: 0.0.40
codegen_flags: <defaults>
</compile_context>

<pallas_src>
import functools

import jax
import jax.numpy as jnp
from jax import lax
from jax.experimental import pallas as pl
from jax.experimental.pallas import tpu as pltpu

LANE = 128
MAX_TILE_N = 16384                 # hard cap on samples per grid step (lane dim)
VMEM_BUDGET = 20 * 1024 * 1024     # budget for double-buffered streams + temporaries
VMEM_LIMIT = 32 * 1024 * 1024      # scoped-VMEM limit (safe on v5e/v6e/v7x)


def _ae_loss_kernel(pred_ref, lbl_ref, out_ref, *, n, c):
    # pred_ref: (C, T) native dtype | lbl_ref: (1, T) i32 | out_ref: (1, 128) f32
    tile_n = pred_ref.shape[1]

    pred = pred_ref[...].astype(jnp.float32)                     # (C, T)
    lbl = lbl_ref[...]                                           # (1, T) int32

    cls = lax.broadcasted_iota(jnp.int32, (c, 1), 0)             # (C, 1), built once per step
    is_true = cls == lbl                                         # (C, T) via broadcast

    # pos = pred[y];  neg = sum_j exp(pred[j]) - exp(pred[y])
    pos = jnp.sum(jnp.where(is_true, pred, 0.0), axis=0, keepdims=True)   # (1, T)
    neg = jnp.sum(jnp.exp(pred), axis=0, keepdims=True) - jnp.exp(pos)    # (1, T)

    # am = log(1 + neg) + log(1 + exp(-pos))  (stable softplus form)
    z = -pos
    softplus_neg_pos = jnp.maximum(z, 0.0) + jnp.log1p(jnp.exp(-jnp.abs(z)))
    am = jnp.log1p(neg) + softplus_neg_pos                       # (1, T)

    # Mask the ragged batch tail in-kernel (no wrapper-side padding).
    sample = pl.program_id(0) * tile_n + lax.broadcasted_iota(jnp.int32, (1, tile_n), 1)
    am = jnp.where(sample < n, am, 0.0)

    # Per-step partial sum, written to this step's own lane-dense output block
    # (no sequential accumulator -> the grid axis can be megacore-parallel).
    partial = jnp.sum(am)
    lane = lax.broadcasted_iota(jnp.int32, (1, LANE), 1)
    out_ref[...] = jnp.where(lane == 0, partial, 0.0)


def ae_loss(pred, labels, max_tile_n=MAX_TILE_N):
    """Mean AE loss, matching AELoss.forward's return value."""
    n, c = pred.shape

    pred_t = pred.T                                   # (C, N), native dtype (no upcast)
    lbl = labels.astype(jnp.int32).reshape(1, n)

    # tile_n from an explicit VMEM budget:
    #   2 buffers x (pred tile + label tile) streams  +  ~3 f32 (C, T) temporaries.
    itemsize = jnp.dtype(pred.dtype).itemsize
    per_lane_bytes = 2 * (c * itemsize + 4) + 3 * c * 4
    tile_n = (VMEM_BUDGET // per_lane_bytes) // LANE * LANE
    tile_n = max(LANE, min(tile_n, max_tile_n, pl.cdiv(n, LANE) * LANE))
    n_tiles = pl.cdiv(n, tile_n)

    kernel = functools.partial(_ae_loss_kernel, n=n, c=c)

    partials = pl.pallas_call(
        kernel,
        out_shape=jax.ShapeDtypeStruct((1, n_tiles * LANE), jnp.float32),
        grid_spec=pltpu.PrefetchScalarGridSpec(
            num_scalar_prefetch=0,
            grid=(n_tiles,),
            in_specs=[
                pl.BlockSpec((c, tile_n), lambda i: (0, i)),   # pred^T tile (ragged tail OK)
                pl.BlockSpec((1, tile_n), lambda i: (0, i)),   # labels tile
            ],
            out_specs=pl.BlockSpec((1, LANE), lambda i: (0, i)),
        ),
        compiler_params=pltpu.CompilerParams(
            dimension_semantics=("parallel",),
            vmem_limit_bytes=VMEM_LIMIT,
        ),
    )(pred_t, lbl)

    return jnp.sum(partials) / jnp.float32(n)


def ae_loss_ref(pred, labels, num_classes):
    """Pure-JAX reference mirroring the PyTorch AELoss.forward return value."""
    pred = pred.astype(jnp.float32)
    one_hot = jax.nn.one_hot(labels, num_classes, dtype=jnp.float32)
    loss_positive = jnp.exp(-jnp.sum(one_hot * pred, axis=1)) + 1.0
    loss_negative = (jnp.sum(jnp.exp(pred), axis=1)
                     - jnp.sum(one_hot * jnp.exp(pred), axis=1) + 1.0)
    am = jnp.log(loss_negative) + jnp.log(loss_positive)
    return jnp.mean(am)


if __name__ == "__main__":
    key = jax.random.PRNGKey(0)
    k1, k2, k3, k4 = jax.random.split(key, 4)

    # Case 1: default module shapes (batch=64, num_classes=10), f32 logits.
    batch, num_classes = 64, 10
    pred = jax.random.normal(k1, (batch, num_classes), jnp.float32)
    labels = jax.random.randint(k2, (batch,), 0, num_classes, jnp.int32)

    out = jax.block_until_ready(ae_loss(pred, labels))
    ref = jax.block_until_ready(ae_loss_ref(pred, labels, num_classes))
    assert jnp.allclose(out, ref, rtol=1e-5, atol=1e-6), (out, ref)

    # Case 2: bf16 logits, ragged batch, multi-tile grid (forced small tile so the
    # parallel partial-sum path and in-kernel tail masking are exercised).
    batch2 = 300
    pred2 = (jax.random.normal(k3, (batch2, num_classes), jnp.float32)
             .astype(jnp.bfloat16))
    labels2 = jax.random.randint(k4, (batch2,), 0, num_classes, jnp.int32)

    out2 = jax.block_until_ready(ae_loss(pred2, labels2, max_tile_n=128))
    ref2 = jax.block_until_ready(ae_loss_ref(pred2, labels2, num_classes))
    assert jnp.allclose(out2, ref2, rtol=1e-4, atol=1e-5), (out2, ref2)

    print("KERNEL_OK")
</pallas_src>

<mosaic_0001>
module attributes {stable_mosaic.version = 11 : i64} {
  func.func @_ae_loss_kernel(%arg0: i32, %arg1: memref<10x128xf32, #tpu.memory_space<vmem>>, %arg2: memref<1x128xi32, #tpu.memory_space<vmem>>, %arg3: memref<1x128xf32, #tpu.memory_space<vmem>>) attributes {dimension_semantics = [#tpu.dimension_semantics<parallel>], iteration_bounds = array<i64: 1>, scalar_prefetch = 0 : i64, scratch_operands = 0 : i64, tpu.core_type = #tpu.core_type<tc>, window_params = [{transform_indices = @transform_0, window_bounds = array<i64: 10, 128>}, {transform_indices = @transform_1, window_bounds = array<i64: 1, 128>}, {transform_indices = @transform_2, window_bounds = array<i64: 1, 128>}]} {
    %c0 = arith.constant 0 : index
    %c0_0 = arith.constant 0 : index
    %0 = vector.load %arg1[%c0, %c0_0] : memref<10x128xf32, #tpu.memory_space<vmem>>, vector<10x128xf32>
    %c0_1 = arith.constant 0 : index
    %c0_2 = arith.constant 0 : index
    %1 = vector.load %arg2[%c0_1, %c0_2] : memref<1x128xi32, #tpu.memory_space<vmem>>, vector<1x128xi32>
    %2 = tpu.iota {dimensions = array<i32: 0>} : vector<10x1xi32>
    %3 = vector.broadcast %2 : vector<10x1xi32> to vector<10x128xi32>
    %4 = vector.broadcast %1 : vector<1x128xi32> to vector<10x128xi32>
    %5 = arith.cmpi eq, %3, %4 : vector<10x128xi32>
    %cst = arith.constant 0.000000e+00 : f32
    %6 = vector.broadcast %cst : f32 to vector<10x128xf32>
    %7 = arith.select %5, %0, %6 : vector<10x128xi1>, vector<10x128xf32>
    %cst_3 = arith.constant dense<0.000000e+00> : vector<128xf32>
    %8 = vector.multi_reduction <add>, %7, %cst_3 [0] : vector<10x128xf32> to vector<128xf32>
    %9 = vector.shape_cast %8 : vector<128xf32> to vector<1x128xf32>
    %10 = math.exp %0 : vector<10x128xf32>
    %cst_4 = arith.constant dense<0.000000e+00> : vector<128xf32>
    %11 = vector.multi_reduction <add>, %10, %cst_4 [0] : vector<10x128xf32> to vector<128xf32>
    %12 = vector.shape_cast %11 : vector<128xf32> to vector<1x128xf32>
    %13 = math.exp %9 : vector<1x128xf32>
    %14 = arith.subf %12, %13 : vector<1x128xf32>
    %cst_5 = arith.constant 0.000000e+00 : f32
    %15 = vector.broadcast %cst_5 : f32 to vector<1x128xf32>
    %16 = arith.subf %15, %9 : vector<1x128xf32>
    %cst_6 = arith.constant 0.000000e+00 : f32
    %17 = vector.broadcast %cst_6 : f32 to vector<1x128xf32>
    %18 = arith.maximumf %16, %17 : vector<1x128xf32>
    %19 = math.absf %16 : vector<1x128xf32>
    %cst_7 = arith.constant 0.000000e+00 : f32
    %20 = vector.broadcast %cst_7 : f32 to vector<1x128xf32>
    %21 = arith.subf %20, %19 : vector<1x128xf32>
    %22 = math.exp %21 : vector<1x128xf32>
    %23 = math.log1p %22 : vector<1x128xf32>
    %24 = arith.addf %18, %23 : vector<1x128xf32>
    %25 = math.log1p %14 : vector<1x128xf32>
    %26 = arith.addf %25, %24 : vector<1x128xf32>
    %c128_i32 = arith.constant 128 : i32
    %27 = arith.muli %arg0, %c128_i32 : i32
    %28 = tpu.iota {dimensions = array<i32: 1>} : vector<1x128xi32>
    %29 = vector.broadcast %27 : i32 to vector<1x128xi32>
    %30 = arith.addi %29, %28 : vector<1x128xi32>
    %c64_i32 = arith.constant 64 : i32
    %31 = vector.broadcast %c64_i32 : i32 to vector<1x128xi32>
    %32 = arith.cmpi slt, %30, %31 : vector<1x128xi32>
    %cst_8 = arith.constant 0.000000e+00 : f32
    %33 = vector.broadcast %cst_8 : f32 to vector<1x128xf32>
    %34 = arith.select %32, %26, %33 : vector<1x128xi1>, vector<1x128xf32>
    %35 = vector.shape_cast %34 : vector<1x128xf32> to vector<1x1x128xf32>
    %cst_9 = arith.constant dense<0.000000e+00> : vector<1xf32>
    %36 = vector.multi_reduction <add>, %35, %cst_9 [1, 2] : vector<1x1x128xf32> to vector<1xf32>
    %37 = vector.shape_cast %36 : vector<1xf32> to vector<1x1x1xf32>
    %38 = vector.extract %37[0, 0, 0] : f32 from vector<1x1x1xf32>
    %39 = tpu.iota {dimensions = array<i32: 1>} : vector<1x128xi32>
    %c0_i32 = arith.constant 0 : i32
    %40 = vector.broadcast %c0_i32 : i32 to vector<1x128xi32>
    %41 = arith.cmpi eq, %39, %40 : vector<1x128xi32>
    %cst_10 = arith.constant 0.000000e+00 : f32
    %42 = vector.broadcast %38 : f32 to vector<1x128xf32>
    %43 = vector.broadcast %cst_10 : f32 to vector<1x128xf32>
    %44 = arith.select %41, %42, %43 : vector<1x128xi1>, vector<1x128xf32>
    %c0_11 = arith.constant 0 : index
    %c0_12 = arith.constant 0 : index
    %45 = vector.load %arg3[%c0_11, %c0_12] : memref<1x128xf32, #tpu.memory_space<vmem>>, vector<1x128xf32>
    tpu.vector_store %arg3[%c0_11, %c0_12], %44 {strides = array<i32>} : memref<1x128xf32, #tpu.memory_space<vmem>>, vector<1x128xf32>,
    return
  }
  func.func @transform_0(%arg0: i32) -> (i32, i32) {
    %c0_i32 = arith.constant 0 : i32
    %c0_i32_0 = arith.constant 0 : i32
    return %c0_i32, %arg0 : i32, i32
  }
  func.func @transform_1(%arg0: i32) -> (i32, i32) {
    %c0_i32 = arith.constant 0 : i32
    %c0_i32_0 = arith.constant 0 : i32
    return %c0_i32, %arg0 : i32, i32
  }
  func.func @transform_2(%arg0: i32) -> (i32, i32) {
    %c0_i32 = arith.constant 0 : i32
    %c0_i32_0 = arith.constant 0 : i32
    return %c0_i32, %arg0 : i32, i32
  }
}

</mosaic_0001>

<llo_original>
// kernel: tpu_custom_call.1
$region0: #{tpu_custom_call.1}
  #allocation0 [shape = 'u32[]', space=smem, size = 0x4, offset = 0x4, fixed_abs, tag = 'smem constant byte address 0x4 - core index']
  #allocation1 [shape = 'u32[144,128]{1,0:T(1,128)}', space=vmem, size = 0x12000, scoped, tag = 'internal scratch']
  %s0 = inlined_call_operand.hbm [shape: f32[10,64], index: 0, kind: input, shape index: {}]
  %s1 = inlined_call_operand.vmem [shape: s32[1,64], index: 1, kind: input, shape index: {}]
  %s2 = inlined_call_operand.hbm [shape: f32[1,128], index: 2, kind: output, shape index: {}]
  %s3 = sld [smem:[#allocation0]]
  $region22: #{tpu_custom_call.1} parent=0
    _
  %s5 = ssub.s32 1, %s3
  %s6 = scalar_select 0, %s5, %s3
  $region1: #{tpu_custom_call.1} parent=0
    #allocation2 [shape = 'u8[8192]{0}', space=vmem, size = 0x2000, scoped, tag = 'input window, operand 0, single buffered']
    #allocation3 [shape = 's32[1]{0}', space=sflag, size = 0x4, scoped, tag = 'scoped memory for tpu_custom_call.1']
    #allocation4 [shape = 's32[1]{0}', space=sflag, size = 0x4, scoped, tag = 'scoped memory for tpu_custom_call.1']
    #allocation5 [shape = 'u8[512]{0}', space=vmem, size = 0x400, scoped, tag = 'output window, operand 0, single buffered']
    %7 = vsyncpa [#allocation3], 0
    %8 = vsyncpa [#allocation4], 0
    // Predicated region
    $region2: #{tpu_custom_call.1} parent=1 // pred_check
      _
    $region3: #{tpu_custom_call.1} parent=1 // pred_check_branch
      %10 = sbr.rel (0) target = $region5
    $region4: #{tpu_custom_call.1} parent=1 // pred_region
      %s12 = ssub.s32 256, 256
      %13 = vsyncadd [#allocation3], %s12
      %s14 = sshll.u32 [#allocation2], 4
      %s15 = int_to_ptr.vmem [resolvable:$true] %s14
      %20 = dma.hbm_to_vmem [thread:$0]  %s0, 256, %s15, [#allocation3], 128, 128, 8
    $region5: #{tpu_custom_call.1} parent=1 // pred_fallthru
      _
    // Predicated region
    $region6: #{tpu_custom_call.1} parent=1 // pred_check
      _
    $region7: #{tpu_custom_call.1} parent=1 // pred_check_branch
      %22 = sbr.rel (0) target = $region9
    $region8: #{tpu_custom_call.1} parent=1 // pred_region
      _
    $region9: #{tpu_custom_call.1} parent=1 // pred_fallthru
      _
    // Predicated region
    $region10: #{tpu_custom_call.1} parent=1 // pred_check
      _
    $region11: #{tpu_custom_call.1} parent=1 // pred_check_branch
      %24 = sbr.rel (0) target = $region13
    $region12: #{tpu_custom_call.1} parent=1 // pred_region
      %25 = dma.done [#allocation3], 256
    $region13: #{tpu_custom_call.1} parent=1 // pred_fallthru
      _
    %v26 = vld [vmem:[#allocation2] sm:$0xff]
    %v27 = vld [vmem:[#allocation2 + $0x8] sm:$0x3]
    %v28 = vld [vmem:[%s1] sm:$0x1]
    %v29 = vlaneseq
    %v30 = vshrl.u32 %v29, 7
    %v31 = vadd.s32 %v30, 8
    %v32 = vlaneseq
    %v33 = vshrl.u32 %v32, 7
    %v34 = vsub.s32 0, %v33
    %v35 = vrot.slane %v28, %v34
    %vm36 = vcmp.eq.s32.totalorder %v30, %v35
    %vm37 = vcmp.eq.s32.totalorder %v31, %v35
    %v38 = vsel %vm36, %v26, 0.0
    %v39 = vsel %vm37, %v27, 0.0
    %vm40 = vcmask 1041408
    %v41 = vsel %vm40, %v39, 0.0
    %v42 = vadd.f32 %v38, %v41
    %v43 = vrot.slane %v42, 4
    %v44 = vadd.f32 %v42, %v43
    %v45 = vrot.slane %v44, 2
    %v46 = vadd.f32 %v44, %v45
    %v47 = vrot.slane %v46, 1
    %v48 = vadd.f32 %v46, %v47
    %v49 = vmul.f32 %v26, 1.442695
    %v50 = vpow.pop %v49
    %v51 = vmul.f32 %v27, 1.442695
    %v52 = vpow.pop %v51
    %v53 = vsel %vm40, %v52, 0.0
    %v54 = vadd.f32 %v50, %v53
    %v55 = vrot.slane %v54, 4
    %v56 = vadd.f32 %v54, %v55
    %v57 = vrot.slane %v56, 2
    %v58 = vadd.f32 %v56, %v57
    %v59 = vrot.slane %v58, 1
    %v60 = vadd.f32 %v58, %v59
    %v61 = vmul.f32 %v48, 1.442695
    %v62 = vpow.pop %v61
    %v63 = vsub.f32 %v60, %v62
    %v64 = vsub.f32 0.0, %v48
    %v65 = vmax.f32 %v64, 0.0
    %v66 = vand.u32 2147483647, %v64
    %v67 = vsub.f32 0.0, %v66
    %v68 = vmul.f32 %v67, 1.442695
    %v69 = vpow.pop %v68
    %v70 = vadd.f32 %v69, 1.0
    %v71 = vlog2.pop %v70
    %v72 = vmul.f32 %v71, 0.6931472
    %v73 = vmul.f32 -0.5, %v69
    %v74 = vadd.f32 %v73, 1.0
    %v75 = vmul.f32 %v74, %v69
    %v76 = vand.u32 2147483647, %v69
    %vm77 = vcmp.lt.f32.partialorder %v76, 0.0004427343
    %v78 = vsel %vm77, %v75, %v72
    %v79 = vadd.f32 %v65, %v78
    %v80 = vadd.f32 %v63, 1.0
    %v81 = vlog2.pop %v80
    %v82 = vmul.f32 %v81, 0.6931472
    %v83 = vmul.f32 -0.5, %v63
    %v84 = vadd.f32 %v83, 1.0
    %v85 = vmul.f32 %v84, %v63
    %v86 = vand.u32 2147483647, %v63
    %vm87 = vcmp.lt.f32.partialorder %v86, 0.0004427343
    %v88 = vsel %vm87, %v85, %v82
    %v89 = vadd.f32 %v88, %v79
    %s90 = smul.u32 0, 128
    %v91 = vlaneseq
    %v92 = vand.u32 %v91, 127
    %v93 = vstv %s90
    %v94 = vadd.s32 %v93, %v92
    %vm95 = vcmp.lt.s32.totalorder %v94, 64
    %v96 = vsel %vm95, %v89, 0.0
    %vm97 = vcmask 1040384
    %v98 = vsel %vm97, %v96, 0.0
    %99 = vadd.xlane.f32.xlu0 %v98
    %v100 = vpop.xlane.xlu0 %99
    %v101 = vrot.slane %v100, 4
    %v102 = vadd.f32 %v100, %v101
    %v103 = vrot.slane %v102, 2
    %v104 = vadd.f32 %v102, %v103
    %v105 = vrot.slane %v104, 1
    %v106 = vadd.f32 %v104, %v105
    %s107 = vtos %v106
    %vm108 = vcmp.eq.s32.totalorder %v92, 0
    %v109 = vstv %s107
    %v110 = vsel %vm108, %v109, 0.0
    %111 = vst [vmem:[#allocation5] sm:$0x1] %v110
    // Predicated region
    $region14: #{tpu_custom_call.1} parent=1 // pred_check
      _
    $region15: #{tpu_custom_call.1} parent=1 // pred_check_branch
      %113 = sbr.rel (0) target = $region17
    $region16: #{tpu_custom_call.1} parent=1 // pred_region
      %s115 = ssub.s32 16, 16
      %116 = vsyncadd [#allocation4], %s115
      %s118 = sshll.u32 [#allocation5], 4
      %s119 = int_to_ptr.vmem [resolvable:$true] %s118
      %121 = dma.vmem_to_hbm [thread:$0]  %s119, 16, %s2, [#allocation4]
    $region17: #{tpu_custom_call.1} parent=1 // pred_fallthru
      _
    // Predicated region
    $region18: #{tpu_custom_call.1} parent=1 // pred_check
      _
    $region19: #{tpu_custom_call.1} parent=1 // pred_check_branch
      %123 = sbr.rel (0) target = $region21
    $region20: #{tpu_custom_call.1} parent=1 // pred_region
      %124 = dma.done [#allocation4], 16
    $region21: #{tpu_custom_call.1} parent=1 // pred_fallthru
      _
    %125 = vsyncpa [#allocation3], 1
    %126 = vsyncpa [#allocation4], 1

</llo_original>
